<compile_context>
chip_gen: v5e
topology: v5e:2x2
jax: 0.10.0
libtpu: 0.0.40
codegen_flags: <defaults>
</compile_context>

<pallas_src>
import jax
import jax.numpy as jnp
from jax.experimental import pallas as pl
from jax.experimental.pallas import tpu as pltpu

HIDDEN = 768          # hidden_size hardcoded in UIE.__init__
NUM_HEADS = 12
FFN_DIM = 3072
VOCAB = 100
MAX_POS = 64
TYPE_VOCAB = 2

TM_MAX = 1024         # rows per tile; 2 x TM x 768 x 2B (bf16) = 3 MiB double-buffered


def _round_up(x, m):
    return (x + m - 1) // m * m


# ----------------------------- Pallas kernel -------------------------------- #
def uie_head_kernel(seq_ref, w_ref, b_ref, out_ref):
    # seq_ref: [TM, H] bf16   w_ref: [H, 2] bf16   b_ref: [1, 2] f32   out_ref: [TM, 2] f32
    logits = jnp.dot(seq_ref[...], w_ref[...], preferred_element_type=jnp.float32)
    out_ref[...] = jax.nn.sigmoid(logits + b_ref[...])


def uie_head(sequence_output, w_start, b_start, w_end, b_end, tm=TM_MAX):
    """sequence_output: [B, S, H] -> (start_prob [B,S], end_prob [B,S])."""
    B, S, H = sequence_output.shape
    BS = B * S

    # bf16 activations (read-bound kernel); f32 accumulation inside the dot.
    seq2d = sequence_output.reshape(BS, H).astype(jnp.bfloat16)

    # Tile size: multiple of 8 (sublane constraint), capped, and BS padded to a
    # multiple of it so the last tile never reads/writes out of bounds.
    tm_eff = min(tm, _round_up(BS, 8))
    padded = _round_up(BS, tm_eff)
    if padded != BS:
        seq2d = jnp.pad(seq2d, ((0, padded - BS), (0, 0)))

    # Head weights packed as [H, 2] (col 0 = start, col 1 = end); stay VMEM-resident.
    w = jnp.stack([w_start, w_end], axis=-1).astype(jnp.bfloat16)          # [H, 2]
    b = jnp.stack([b_start, b_end]).reshape(1, 2).astype(jnp.float32)      # [1, 2]

    probs = pl.pallas_call(
        uie_head_kernel,
        out_shape=jax.ShapeDtypeStruct((padded, 2), jnp.float32),
        grid=(pl.cdiv(padded, tm_eff),),
        in_specs=[
            pl.BlockSpec((tm_eff, H), lambda i: (i, 0)),   # tiled tokens (double-buffered)
            pl.BlockSpec((H, 2), lambda i: (0, 0)),        # resident head weights
            pl.BlockSpec((1, 2), lambda i: (0, 0)),        # resident bias
        ],
        out_specs=pl.BlockSpec((tm_eff, 2), lambda i: (i, 0)),
        compiler_params=pltpu.CompilerParams(
            dimension_semantics=("parallel",)),            # megacore: shard token tiles
    )(seq2d, w, b)

    probs = probs[:BS].reshape(B, S, 2)
    return probs[..., 0], probs[..., 1]


# ------------------------ synthetic encoder (JAX glue) ----------------------- #
# TODO(synk): real UIE uses an external pretrained HF encoder; replaced here by a
# deterministic synthetic embedding + 1-layer transformer encoder (plain JAX).
def layer_norm(x, g, b, eps=1e-12):
    mu = jnp.mean(x, axis=-1, keepdims=True)
    var = jnp.mean((x - mu) ** 2, axis=-1, keepdims=True)
    return (x - mu) * jax.lax.rsqrt(var + eps) * g + b


def synthetic_encoder(params, input_ids, token_type_ids, attention_mask, pos_ids):
    p = params
    x = (p["word_emb"][input_ids]
         + p["pos_emb"][pos_ids]
         + p["type_emb"][token_type_ids])
    x = layer_norm(x, p["ln0_g"], p["ln0_b"])

    B, S, H = x.shape
    hd = H // NUM_HEADS

    def split_heads(t):
        return t.reshape(B, S, NUM_HEADS, hd).transpose(0, 2, 1, 3)

    q = split_heads(x @ p["wq"] + p["bq"])
    k = split_heads(x @ p["wk"] + p["bk"])
    v = split_heads(x @ p["wv"] + p["bv"])

    scores = jnp.einsum("bhqd,bhkd->bhqk", q, k) / jnp.sqrt(jnp.float32(hd))
    mask = attention_mask.astype(jnp.float32)[:, None, None, :]   # [B,1,1,S]
    scores = scores + (1.0 - mask) * -1e9
    attn = jax.nn.softmax(scores, axis=-1)
    ctx = jnp.einsum("bhqk,bhkd->bhqd", attn, v).transpose(0, 2, 1, 3).reshape(B, S, H)

    x = layer_norm(x + ctx @ p["wo"] + p["bo"], p["ln1_g"], p["ln1_b"])
    ff = jax.nn.gelu(x @ p["w1"] + p["b1"]) @ p["w2"] + p["b2"]
    x = layer_norm(x + ff, p["ln2_g"], p["ln2_b"])
    return x  # last_hidden_state [B, S, H]


def init_params(key):
    ks = jax.random.split(key, 16)
    s = 0.02
    H, F = HIDDEN, FFN_DIM
    return {
        "word_emb": jax.random.normal(ks[0], (VOCAB, H), jnp.float32) * s,
        "pos_emb":  jax.random.normal(ks[1], (MAX_POS, H), jnp.float32) * s,
        "type_emb": jax.random.normal(ks[2], (TYPE_VOCAB, H), jnp.float32) * s,
        "ln0_g": jnp.ones((H,), jnp.float32), "ln0_b": jnp.zeros((H,), jnp.float32),
        "wq": jax.random.normal(ks[3], (H, H), jnp.float32) * s, "bq": jnp.zeros((H,), jnp.float32),
        "wk": jax.random.normal(ks[4], (H, H), jnp.float32) * s, "bk": jnp.zeros((H,), jnp.float32),
        "wv": jax.random.normal(ks[5], (H, H), jnp.float32) * s, "bv": jnp.zeros((H,), jnp.float32),
        "wo": jax.random.normal(ks[6], (H, H), jnp.float32) * s, "bo": jnp.zeros((H,), jnp.float32),
        "ln1_g": jnp.ones((H,), jnp.float32), "ln1_b": jnp.zeros((H,), jnp.float32),
        "w1": jax.random.normal(ks[7], (H, F), jnp.float32) * s, "b1": jnp.zeros((F,), jnp.float32),
        "w2": jax.random.normal(ks[8], (F, H), jnp.float32) * s, "b2": jnp.zeros((H,), jnp.float32),
        "ln2_g": jnp.ones((H,), jnp.float32), "ln2_b": jnp.zeros((H,), jnp.float32),
        # UIE head params (nn.Linear(768, 1) x2): weight [1,768] -> stored as [768]
        "w_start": jax.random.normal(ks[9], (H,), jnp.float32) * s,
        "b_start": jnp.zeros((), jnp.float32),
        "w_end":   jax.random.normal(ks[10], (H,), jnp.float32) * s,
        "b_end":   jnp.zeros((), jnp.float32),
    }


def uie_forward(params, input_ids, token_type_ids, attention_mask, pos_ids):
    # TODO(synk): for full end-to-end gains the head could be fused into the
    # encoder epilogue (it is a [*,768]x[768,2] GEMV on the last layer norm).
    seq = synthetic_encoder(params, input_ids, token_type_ids, attention_mask, pos_ids)
    return uie_head(seq, params["w_start"], params["b_start"],
                    params["w_end"], params["b_end"])


if __name__ == "__main__":
    B, S = 2, 8
    key = jax.random.PRNGKey(0)
    kp, ki = jax.random.split(key)

    params = init_params(kp)
    input_ids = jax.random.randint(ki, (B, S), 0, VOCAB, dtype=jnp.int32)
    token_type_ids = jnp.zeros((B, S), jnp.int32)
    attention_mask = jnp.ones((B, S), jnp.int32).at[1, -2:].set(0)  # pad tail of batch 1
    pos_ids = jnp.tile(jnp.arange(S, dtype=jnp.int32)[None, :], (B, 1))

    start_prob, end_prob = jax.jit(uie_forward)(params, input_ids, token_type_ids,
                                                attention_mask, pos_ids)
    jax.block_until_ready((start_prob, end_prob))

    # -------- reference checks for the Pallas head --------
    seq_ref = synthetic_encoder(params, input_ids, token_type_ids, attention_mask, pos_ids)

    # (a) bf16-matched reference: same bf16 input rounding, f32 accumulation.
    seq_bf = seq_ref.astype(jnp.bfloat16).astype(jnp.float32)
    ws_bf = params["w_start"].astype(jnp.bfloat16).astype(jnp.float32)
    we_bf = params["w_end"].astype(jnp.bfloat16).astype(jnp.float32)
    sp_bf = jax.nn.sigmoid(jnp.einsum("bsh,h->bs", seq_bf, ws_bf) + params["b_start"])
    ep_bf = jax.nn.sigmoid(jnp.einsum("bsh,h->bs", seq_bf, we_bf) + params["b_end"])

    # (b) full-f32 semantic reference (looser tolerance due to bf16 inputs).
    sp_f32 = jax.nn.sigmoid(jnp.einsum("bsh,h->bs", seq_ref, params["w_start"]) + params["b_start"])
    ep_f32 = jax.nn.sigmoid(jnp.einsum("bsh,h->bs", seq_ref, params["w_end"]) + params["b_end"])

    assert start_prob.shape == (B, S) and end_prob.shape == (B, S)
    assert jnp.allclose(start_prob, sp_bf, atol=1e-4), "start head mismatch (bf16-matched ref)"
    assert jnp.allclose(end_prob, ep_bf, atol=1e-4), "end head mismatch (bf16-matched ref)"
    assert jnp.allclose(start_prob, sp_f32, atol=5e-3), "start head far from f32 ref"
    assert jnp.allclose(end_prob, ep_f32, atol=5e-3), "end head far from f32 ref"

    print("KERNEL_OK")
</pallas_src>

<mosaic_0001>
module attributes {stable_mosaic.version = 11 : i64} {
  func.func @uie_head_kernel(%arg0: i32, %arg1: memref<16x768xbf16, #tpu.memory_space<vmem>>, %arg2: memref<768x2xbf16, #tpu.memory_space<vmem>>, %arg3: memref<1x2xf32, #tpu.memory_space<vmem>>, %arg4: memref<16x2xf32, #tpu.memory_space<vmem>>) attributes {dimension_semantics = [#tpu.dimension_semantics<parallel>], iteration_bounds = array<i64: 1>, scalar_prefetch = 0 : i64, scratch_operands = 0 : i64, tpu.core_type = #tpu.core_type<tc>, window_params = [{transform_indices = @transform_0, window_bounds = array<i64: 16, 768>}, {pipeline_mode = #tpu.pipeline_mode<synchronous>, transform_indices = @transform_1, window_bounds = array<i64: 768, 2>}, {pipeline_mode = #tpu.pipeline_mode<synchronous>, transform_indices = @transform_2, window_bounds = array<i64: 1, 2>}, {transform_indices = @transform_3, window_bounds = array<i64: 16, 2>}]} {
    %c0 = arith.constant 0 : index
    %c0_0 = arith.constant 0 : index
    %0 = vector.load %arg1[%c0, %c0_0] : memref<16x768xbf16, #tpu.memory_space<vmem>>, vector<16x768xbf16>
    %c0_1 = arith.constant 0 : index
    %c0_2 = arith.constant 0 : index
    %1 = vector.load %arg2[%c0_1, %c0_2] : memref<768x2xbf16, #tpu.memory_space<vmem>>, vector<768x2xbf16>
    %cst = arith.constant dense<0.000000e+00> : vector<16x2xf32>
    %2 = tpu.matmul %0, %1, %cst {dimension_numbers = #tpu.dot_dimension_numbers<[1], [0], [0], [1], [0, 0, 1, 1], [], []>} : vector<16x768xbf16>, vector<768x2xbf16>, vector<16x2xf32> -> vector<16x2xf32>
    %c0_3 = arith.constant 0 : index
    %c0_4 = arith.constant 0 : index
    %3 = vector.load %arg3[%c0_3, %c0_4] : memref<1x2xf32, #tpu.memory_space<vmem>>, vector<1x2xf32>
    %4 = vector.broadcast %3 : vector<1x2xf32> to vector<16x2xf32>
    %5 = arith.addf %2, %4 : vector<16x2xf32>
    %6 = arith.negf %5 : vector<16x2xf32>
    %7 = math.exp %6 : vector<16x2xf32>
    %cst_5 = arith.constant 1.000000e+00 : f32
    %8 = vector.broadcast %cst_5 : f32 to vector<16x2xf32>
    %9 = arith.addf %8, %7 : vector<16x2xf32>
    %10 = arith.divf %8, %9 : vector<16x2xf32>
    %c0_6 = arith.constant 0 : index
    %c0_7 = arith.constant 0 : index
    %11 = vector.load %arg4[%c0_6, %c0_7] : memref<16x2xf32, #tpu.memory_space<vmem>>, vector<16x2xf32>
    tpu.vector_store %arg4[%c0_6, %c0_7], %10 {strides = array<i32>} : memref<16x2xf32, #tpu.memory_space<vmem>>, vector<16x2xf32>,
    return
  }
  func.func @transform_0(%arg0: i32) -> (i32, i32) {
    %c0_i32 = arith.constant 0 : i32
    %c0_i32_0 = arith.constant 0 : i32
    return %arg0, %c0_i32 : i32, i32
  }
  func.func @transform_1(%arg0: i32) -> (i32, i32) {
    %c0_i32 = arith.constant 0 : i32
    %c0_i32_0 = arith.constant 0 : i32
    %c0_i32_1 = arith.constant 0 : i32
    return %c0_i32, %c0_i32_0 : i32, i32
  }
  func.func @transform_2(%arg0: i32) -> (i32, i32) {
    %c0_i32 = arith.constant 0 : i32
    %c0_i32_0 = arith.constant 0 : i32
    %c0_i32_1 = arith.constant 0 : i32
    return %c0_i32, %c0_i32_0 : i32, i32
  }
  func.func @transform_3(%arg0: i32) -> (i32, i32) {
    %c0_i32 = arith.constant 0 : i32
    %c0_i32_0 = arith.constant 0 : i32
    return %arg0, %c0_i32 : i32, i32
  }
}

</mosaic_0001>

<llo_original>
// kernel: uie_forward.1
$region0: #{uie_forward.1}
  #allocation0 [shape = 'u32[]', space=smem, size = 0x4, offset = 0x4, fixed_abs, tag = 'smem constant byte address 0x4 - core index']
  #allocation1 [shape = 'u32[72,128]{1,0:T(1,128)}', space=vmem, size = 0x9000, scoped, tag = 'internal scratch']
  %s0 = inlined_call_operand.vmem [shape: bf16[16,768], index: 0, kind: input, shape index: {}]
  %s1 = inlined_call_operand.vmem [shape: bf16[768,2], index: 1, kind: input, shape index: {}]
  %s2 = inlined_call_operand.vmem [shape: f32[1,2], index: 2, kind: input, shape index: {}]
  %s3 = inlined_call_operand.vmem [shape: f32[16,2], index: 3, kind: output, shape index: {}]
  %s4 = sld [smem:[#allocation0]]
  $region22: #{uie_forward.1} parent=0
    _
  %s6 = ssub.s32 1, %s4
  %s7 = scalar_select 0, %s6, %s4
  // Predicated region
  $region2: #{uie_forward.1} parent=0 // pred_check
    _
  $region3: #{uie_forward.1} parent=0 // pred_check_branch
    %9 = sbr.rel (0) target = $region5
  $region4: #{uie_forward.1} parent=0 // pred_region
    _
  $region5: #{uie_forward.1} parent=0 // pred_fallthru
    _
  // Predicated region
  $region6: #{uie_forward.1} parent=0 // pred_check
    _
  $region7: #{uie_forward.1} parent=0 // pred_check_branch
    %11 = sbr.rel (0) target = $region9
  $region8: #{uie_forward.1} parent=0 // pred_region
    _
  $region9: #{uie_forward.1} parent=0 // pred_fallthru
    _
  // Predicated region
  $region10: #{uie_forward.1} parent=0 // pred_check
    _
  $region11: #{uie_forward.1} parent=0 // pred_check_branch
    %13 = sbr.rel (0) target = $region13
  $region12: #{uie_forward.1} parent=0 // pred_region
    _
  $region13: #{uie_forward.1} parent=0 // pred_fallthru
    _
  %v14 = vld [vmem:[%s0] sm:$0xff]
  %v15 = vld [vmem:[%s0 + $0x8] sm:$0xff]
  %v16 = vld [vmem:[%s0 + $0x10] sm:$0xff]
  %v17 = vld [vmem:[%s0 + $0x18] sm:$0xff]
  %v18 = vld [vmem:[%s0 + $0x20] sm:$0xff]
  %v19 = vld [vmem:[%s0 + $0x28] sm:$0xff]
  %v20 = vld [vmem:[%s1] sm:$0xf]
  %v21 = vld [vmem:[%s1 + $0x4] sm:$0xf]
  %v22 = vld [vmem:[%s1 + $0x8] sm:$0xf]
  %v23 = vld [vmem:[%s1 + $0xc] sm:$0xf]
  %v24 = vld [vmem:[%s1 + $0x10] sm:$0xf]
  %v25 = vld [vmem:[%s1 + $0x14] sm:$0xf]
  %v26 = vld [vmem:[%s1 + $0x18] sm:$0xf]
  %v27 = vld [vmem:[%s1 + $0x1c] sm:$0xf]
  %v28 = vld [vmem:[%s1 + $0x20] sm:$0xf]
  %v29 = vld [vmem:[%s1 + $0x24] sm:$0xf]
  %v30 = vld [vmem:[%s1 + $0x28] sm:$0xf]
  %v31 = vld [vmem:[%s1 + $0x2c] sm:$0xf]
  %v32 = vld [vmem:[%s1 + $0x30] sm:$0xf]
  %v33 = vld [vmem:[%s1 + $0x34] sm:$0xf]
  %v34 = vld [vmem:[%s1 + $0x38] sm:$0xf]
  %v35 = vld [vmem:[%s1 + $0x3c] sm:$0xf]
  %v36 = vld [vmem:[%s1 + $0x40] sm:$0xf]
  %v37 = vld [vmem:[%s1 + $0x44] sm:$0xf]
  %v38 = vld [vmem:[%s1 + $0x48] sm:$0xf]
  %v39 = vld [vmem:[%s1 + $0x4c] sm:$0xf]
  %v40 = vld [vmem:[%s1 + $0x50] sm:$0xf]
  %v41 = vld [vmem:[%s1 + $0x54] sm:$0xf]
  %v42 = vld [vmem:[%s1 + $0x58] sm:$0xf]
  %v43 = vld [vmem:[%s1 + $0x5c] sm:$0xf]
  %v44 = vld [vmem:[%s1 + $0x60] sm:$0xf]
  %v45 = vld [vmem:[%s1 + $0x64] sm:$0xf]
  %v46 = vld [vmem:[%s1 + $0x68] sm:$0xf]
  %v47 = vld [vmem:[%s1 + $0x6c] sm:$0xf]
  %v48 = vld [vmem:[%s1 + $0x70] sm:$0xf]
  %v49 = vld [vmem:[%s1 + $0x74] sm:$0xf]
  %v50 = vld [vmem:[%s1 + $0x78] sm:$0xf]
  %v51 = vld [vmem:[%s1 + $0x7c] sm:$0xf]
  %v52 = vld [vmem:[%s1 + $0x80] sm:$0xf]
  %v53 = vld [vmem:[%s1 + $0x84] sm:$0xf]
  %v54 = vld [vmem:[%s1 + $0x88] sm:$0xf]
  %v55 = vld [vmem:[%s1 + $0x8c] sm:$0xf]
  %v56 = vld [vmem:[%s1 + $0x90] sm:$0xf]
  %v57 = vld [vmem:[%s1 + $0x94] sm:$0xf]
  %v58 = vld [vmem:[%s1 + $0x98] sm:$0xf]
  %v59 = vld [vmem:[%s1 + $0x9c] sm:$0xf]
  %v60 = vld [vmem:[%s1 + $0xa0] sm:$0xf]
  %v61 = vld [vmem:[%s1 + $0xa4] sm:$0xf]
  %v62 = vld [vmem:[%s1 + $0xa8] sm:$0xf]
  %v63 = vld [vmem:[%s1 + $0xac] sm:$0xf]
  %v64 = vld [vmem:[%s1 + $0xb0] sm:$0xf]
  %v65 = vld [vmem:[%s1 + $0xb4] sm:$0xf]
  %v66 = vld [vmem:[%s1 + $0xb8] sm:$0xf]
  %v67 = vld [vmem:[%s1 + $0xbc] sm:$0xf]
  %v68 = vld [vmem:[%s1 + $0xc0] sm:$0xf]
  %v69 = vld [vmem:[%s1 + $0xc4] sm:$0xf]
  %v70 = vld [vmem:[%s1 + $0xc8] sm:$0xf]
  %v71 = vld [vmem:[%s1 + $0xcc] sm:$0xf]
  %v72 = vld [vmem:[%s1 + $0xd0] sm:$0xf]
  %v73 = vld [vmem:[%s1 + $0xd4] sm:$0xf]
  %v74 = vld [vmem:[%s1 + $0xd8] sm:$0xf]
  %v75 = vld [vmem:[%s1 + $0xdc] sm:$0xf]
  %v76 = vld [vmem:[%s1 + $0xe0] sm:$0xf]
  %v77 = vld [vmem:[%s1 + $0xe4] sm:$0xf]
  %v78 = vld [vmem:[%s1 + $0xe8] sm:$0xf]
  %v79 = vld [vmem:[%s1 + $0xec] sm:$0xf]
  %v80 = vld [vmem:[%s1 + $0xf0] sm:$0xf]
  %v81 = vld [vmem:[%s1 + $0xf4] sm:$0xf]
  %v82 = vld [vmem:[%s1 + $0xf8] sm:$0xf]
  %v83 = vld [vmem:[%s1 + $0xfc] sm:$0xf]
  %v84 = vld [vmem:[%s1 + $0x100] sm:$0xf]
  %v85 = vld [vmem:[%s1 + $0x104] sm:$0xf]
  %v86 = vld [vmem:[%s1 + $0x108] sm:$0xf]
  %v87 = vld [vmem:[%s1 + $0x10c] sm:$0xf]
  %v88 = vld [vmem:[%s1 + $0x110] sm:$0xf]
  %v89 = vld [vmem:[%s1 + $0x114] sm:$0xf]
  %v90 = vld [vmem:[%s1 + $0x118] sm:$0xf]
  %v91 = vld [vmem:[%s1 + $0x11c] sm:$0xf]
  %v92 = vld [vmem:[%s1 + $0x120] sm:$0xf]
  %v93 = vld [vmem:[%s1 + $0x124] sm:$0xf]
  %v94 = vld [vmem:[%s1 + $0x128] sm:$0xf]
  %v95 = vld [vmem:[%s1 + $0x12c] sm:$0xf]
  %v96 = vld [vmem:[%s1 + $0x130] sm:$0xf]
  %v97 = vld [vmem:[%s1 + $0x134] sm:$0xf]
  %v98 = vld [vmem:[%s1 + $0x138] sm:$0xf]
  %v99 = vld [vmem:[%s1 + $0x13c] sm:$0xf]
  %v100 = vld [vmem:[%s1 + $0x140] sm:$0xf]
  %v101 = vld [vmem:[%s1 + $0x144] sm:$0xf]
  %v102 = vld [vmem:[%s1 + $0x148] sm:$0xf]
  %v103 = vld [vmem:[%s1 + $0x14c] sm:$0xf]
  %v104 = vld [vmem:[%s1 + $0x150] sm:$0xf]
  %v105 = vld [vmem:[%s1 + $0x154] sm:$0xf]
  %v106 = vld [vmem:[%s1 + $0x158] sm:$0xf]
  %v107 = vld [vmem:[%s1 + $0x15c] sm:$0xf]
  %v108 = vld [vmem:[%s1 + $0x160] sm:$0xf]
  %v109 = vld [vmem:[%s1 + $0x164] sm:$0xf]
  %v110 = vld [vmem:[%s1 + $0x168] sm:$0xf]
  %v111 = vld [vmem:[%s1 + $0x16c] sm:$0xf]
  %v112 = vld [vmem:[%s1 + $0x170] sm:$0xf]
  %v113 = vld [vmem:[%s1 + $0x174] sm:$0xf]
  %v114 = vld [vmem:[%s1 + $0x178] sm:$0xf]
  %v115 = vld [vmem:[%s1 + $0x17c] sm:$0xf]
  %v116 = vld [vmem:[%s2] sm:$0x1]
  %v118 = vperm.slane %v116, 0
  %v126 = vunpack.c.l.b16 %v14
  %v127 = vunpack.c.h.b16 %v14
  %v128 = vunpack.c.l.b16 %v15
  %v129 = vunpack.c.h.b16 %v15
  %v130 = vunpack.c.l.b16 %v16
  %v131 = vunpack.c.h.b16 %v16
  %v132 = vunpack.c.l.b16 %v17
  %v133 = vunpack.c.h.b16 %v17
  %v134 = vunpack.c.l.b16 %v18
  %v135 = vunpack.c.h.b16 %v18
  %v136 = vunpack.c.l.b16 %v19
  %v137 = vunpack.c.h.b16 %v19
  %v138 = vpack.c.b16 %v132, %v126
  %v139 = vpack.c.b16 %v133, %v127
  %v140 = vpack.c.b16 %v134, %v128
  %v141 = vpack.c.b16 %v135, %v129
  %v142 = vpack.c.b16 %v136, %v130
  %v143 = vpack.c.b16 %v137, %v131
  %v246 = vunpack.c.l.b16 %v20
  %v247 = vunpack.c.l.b16 %v21
  %v248 = vunpack.c.l.b16 %v22
  %v249 = vunpack.c.l.b16 %v23
  %v250 = vunpack.c.l.b16 %v24
  %v251 = vunpack.c.l.b16 %v25
  %v252 = vunpack.c.l.b16 %v26
  %v253 = vunpack.c.l.b16 %v27
  %v254 = vunpack.c.l.b16 %v28
  %v255 = vunpack.c.l.b16 %v29
  %v256 = vunpack.c.l.b16 %v30
  %v257 = vunpack.c.l.b16 %v31
  %v258 = vunpack.c.l.b16 %v32
  %v259 = vunpack.c.l.b16 %v33
  %v260 = vunpack.c.l.b16 %v34
  %v261 = vunpack.c.l.b16 %v35
  %v262 = vunpack.c.l.b16 %v36
  %v263 = vunpack.c.l.b16 %v37
  %v264 = vunpack.c.l.b16 %v38
  %v265 = vunpack.c.l.b16 %v39
  %v266 = vunpack.c.l.b16 %v40
  %v267 = vunpack.c.l.b16 %v41
  %v268 = vunpack.c.l.b16 %v42
  %v269 = vunpack.c.l.b16 %v43
  %v270 = vunpack.c.l.b16 %v44
  %v271 = vunpack.c.l.b16 %v45
  %v272 = vunpack.c.l.b16 %v46
  %v273 = vunpack.c.l.b16 %v47
  %v274 = vunpack.c.l.b16 %v48
  %v275 = vunpack.c.l.b16 %v49
  %v276 = vunpack.c.l.b16 %v50
  %v277 = vunpack.c.l.b16 %v51
  %v278 = vunpack.c.l.b16 %v52
  %v279 = vunpack.c.l.b16 %v53
  %v280 = vunpack.c.l.b16 %v54
  %v281 = vunpack.c.l.b16 %v55
  %v282 = vunpack.c.l.b16 %v56
  %v283 = vunpack.c.l.b16 %v57
  %v284 = vunpack.c.l.b16 %v58
  %v285 = vunpack.c.l.b16 %v59
  %v286 = vunpack.c.l.b16 %v60
  %v287 = vunpack.c.l.b16 %v61
  %v288 = vunpack.c.l.b16 %v62
  %v289 = vunpack.c.l.b16 %v63
  %v290 = vunpack.c.l.b16 %v64
  %v291 = vunpack.c.l.b16 %v65
  %v292 = vunpack.c.l.b16 %v66
  %v293 = vunpack.c.l.b16 %v67
  %v294 = vunpack.c.l.b16 %v68
  %v295 = vunpack.c.l.b16 %v69
  %v296 = vunpack.c.l.b16 %v70
  %v297 = vunpack.c.l.b16 %v71
  %v298 = vunpack.c.l.b16 %v72
  %v299 = vunpack.c.l.b16 %v73
  %v300 = vunpack.c.l.b16 %v74
  %v301 = vunpack.c.l.b16 %v75
  %v302 = vunpack.c.l.b16 %v76
  %v303 = vunpack.c.l.b16 %v77
  %v304 = vunpack.c.l.b16 %v78
  %v305 = vunpack.c.l.b16 %v79
  %v306 = vunpack.c.l.b16 %v80
  %v307 = vunpack.c.l.b16 %v81
  %v308 = vunpack.c.l.b16 %v82
  %v309 = vunpack.c.l.b16 %v83
  %v310 = vunpack.c.l.b16 %v84
  %v311 = vunpack.c.l.b16 %v85
  %v312 = vunpack.c.l.b16 %v86
  %v313 = vunpack.c.l.b16 %v87
  %v314 = vunpack.c.l.b16 %v88
  %v315 = vunpack.c.l.b16 %v89
  %v316 = vunpack.c.l.b16 %v90
  %v317 = vunpack.c.l.b16 %v91
  %v318 = vunpack.c.l.b16 %v92
  %v319 = vunpack.c.l.b16 %v93
  %v320 = vunpack.c.l.b16 %v94
  %v321 = vunpack.c.l.b16 %v95
  %v322 = vunpack.c.l.b16 %v96
  %v323 = vunpack.c.l.b16 %v97
  %v324 = vunpack.c.l.b16 %v98
  %v325 = vunpack.c.l.b16 %v99
  %v326 = vunpack.c.l.b16 %v100
  %v327 = vunpack.c.l.b16 %v101
  %v328 = vunpack.c.l.b16 %v102
  %v329 = vunpack.c.l.b16 %v103
  %v330 = vunpack.c.l.b16 %v104
  %v331 = vunpack.c.l.b16 %v105
  %v332 = vunpack.c.l.b16 %v106
  %v333 = vunpack.c.l.b16 %v107
  %v334 = vunpack.c.l.b16 %v108
  %v335 = vunpack.c.l.b16 %v109
  %v336 = vunpack.c.l.b16 %v110
  %v337 = vunpack.c.l.b16 %v111
  %v338 = vunpack.c.l.b16 %v112
  %v339 = vunpack.c.l.b16 %v113
  %v340 = vunpack.c.l.b16 %v114
  %v341 = vunpack.c.l.b16 %v115
  %v342 = vpack.c.b16 %v247, %v246
  %v343 = vpack.c.b16 %v249, %v248
  %v344 = vpack.c.b16 %v251, %v250
  %v345 = vpack.c.b16 %v253, %v252
  %v346 = vpack.c.b16 %v255, %v254
  %v347 = vpack.c.b16 %v257, %v256
  %v348 = vpack.c.b16 %v259, %v258
  %v349 = vpack.c.b16 %v261, %v260
  %v350 = vpack.c.b16 %v263, %v262
  %v351 = vpack.c.b16 %v265, %v264
  %v352 = vpack.c.b16 %v267, %v266
  %v353 = vpack.c.b16 %v269, %v268
  %v354 = vpack.c.b16 %v271, %v270
  %v355 = vpack.c.b16 %v273, %v272
  %v356 = vpack.c.b16 %v275, %v274
  %v357 = vpack.c.b16 %v277, %v276
  %v358 = vpack.c.b16 %v279, %v278
  %v359 = vpack.c.b16 %v281, %v280
  %v360 = vpack.c.b16 %v283, %v282
  %v361 = vpack.c.b16 %v285, %v284
  %v362 = vpack.c.b16 %v287, %v286
  %v363 = vpack.c.b16 %v289, %v288
  %v364 = vpack.c.b16 %v291, %v290
  %v365 = vpack.c.b16 %v293, %v292
  %v366 = vpack.c.b16 %v295, %v294
  %v367 = vpack.c.b16 %v297, %v296
  %v368 = vpack.c.b16 %v299, %v298
  %v369 = vpack.c.b16 %v301, %v300
  %v370 = vpack.c.b16 %v303, %v302
  %v371 = vpack.c.b16 %v305, %v304
  %v372 = vpack.c.b16 %v307, %v306
  %v373 = vpack.c.b16 %v309, %v308
  %v374 = vpack.c.b16 %v311, %v310
  %v375 = vpack.c.b16 %v313, %v312
  %v376 = vpack.c.b16 %v315, %v314
  %v377 = vpack.c.b16 %v317, %v316
  %v378 = vpack.c.b16 %v319, %v318
  %v379 = vpack.c.b16 %v321, %v320
  %v380 = vpack.c.b16 %v323, %v322
  %v381 = vpack.c.b16 %v325, %v324
  %v382 = vpack.c.b16 %v327, %v326
  %v383 = vpack.c.b16 %v329, %v328
  %v384 = vpack.c.b16 %v331, %v330
  %v385 = vpack.c.b16 %v333, %v332
  %v386 = vpack.c.b16 %v335, %v334
  %v387 = vpack.c.b16 %v337, %v336
  %v388 = vpack.c.b16 %v339, %v338
  %v389 = vpack.c.b16 %v341, %v340
  %438 = vmatpush.bf16.msra.mxu0 %v349
  %439 = vmatpush.bf16.msra.mxu0 %v348
  %440 = vmatpush.bf16.msra.mxu0 %v347
  %441 = vmatpush.bf16.msra.mxu0 %v346
  %442 = vmatpush.bf16.msra.mxu0 %v345
  %443 = vmatpush.bf16.msra.mxu0 %v344
  %444 = vmatpush.bf16.msra.mxu0 %v343
  %445 = vmatpush.bf16.msra.mxu0 %v342
  %446 = vmatmul.bf16.gmra.mxu0 %v138
  %v447 = vpop.f32.mrf.mxu0
  %v448 = vadd.f32 %v118, %v447
  %v449 = vpop.f32.mrf.mxu0
  %v450 = vadd.f32 %v118, %v449
  %451 = vdwg.mxu0
  %452 = vmatpush.bf16.msra.mxu0 %v357
  %453 = vmatpush.bf16.msra.mxu0 %v356
  %454 = vmatpush.bf16.msra.mxu0 %v355
  %455 = vmatpush.bf16.msra.mxu0 %v354
  %456 = vmatpush.bf16.msra.mxu0 %v353
  %457 = vmatpush.bf16.msra.mxu0 %v352
  %458 = vmatpush.bf16.msra.mxu0 %v351
  %459 = vmatpush.bf16.msra.mxu0 %v350
  %460 = vmatmul.bf16.gmra.mxu0 %v139
  %v461 = vpop.f32.mrf.mxu0
  %v462 = vadd.f32 %v448, %v461
  %v463 = vpop.f32.mrf.mxu0
  %v464 = vadd.f32 %v450, %v463
  %465 = vdwg.mxu0
  %466 = vmatpush.bf16.msra.mxu0 %v365
  %467 = vmatpush.bf16.msra.mxu0 %v364
  %468 = vmatpush.bf16.msra.mxu0 %v363
  %469 = vmatpush.bf16.msra.mxu0 %v362
  %470 = vmatpush.bf16.msra.mxu0 %v361
  %471 = vmatpush.bf16.msra.mxu0 %v360
  %472 = vmatpush.bf16.msra.mxu0 %v359
  %473 = vmatpush.bf16.msra.mxu0 %v358
  %474 = vmatmul.bf16.gmra.mxu0 %v140
  %v475 = vpop.f32.mrf.mxu0
  %v476 = vadd.f32 %v462, %v475
  %v477 = vpop.f32.mrf.mxu0
  %v478 = vadd.f32 %v464, %v477
  %479 = vdwg.mxu0
  %480 = vmatpush.bf16.msra.mxu0 %v373
  %481 = vmatpush.bf16.msra.mxu0 %v372
  %482 = vmatpush.bf16.msra.mxu0 %v371
  %483 = vmatpush.bf16.msra.mxu0 %v370
  %484 = vmatpush.bf16.msra.mxu0 %v369
  %485 = vmatpush.bf16.msra.mxu0 %v368
  %486 = vmatpush.bf16.msra.mxu0 %v367
  %487 = vmatpush.bf16.msra.mxu0 %v366
  %488 = vmatmul.bf16.gmra.mxu0 %v141
  %v489 = vpop.f32.mrf.mxu0
  %v490 = vadd.f32 %v476, %v489
  %v491 = vpop.f32.mrf.mxu0
  %v492 = vadd.f32 %v478, %v491
  %493 = vdwg.mxu0
  %494 = vmatpush.bf16.msra.mxu0 %v381
  %495 = vmatpush.bf16.msra.mxu0 %v380
  %496 = vmatpush.bf16.msra.mxu0 %v379
  %497 = vmatpush.bf16.msra.mxu0 %v378
  %498 = vmatpush.bf16.msra.mxu0 %v377
  %499 = vmatpush.bf16.msra.mxu0 %v376
  %500 = vmatpush.bf16.msra.mxu0 %v375
  %501 = vmatpush.bf16.msra.mxu0 %v374
  %502 = vmatmul.bf16.gmra.mxu0 %v142
  %v503 = vpop.f32.mrf.mxu0
  %v504 = vadd.f32 %v490, %v503
  %v505 = vpop.f32.mrf.mxu0
  %v506 = vadd.f32 %v492, %v505
  %507 = vdwg.mxu0
  %508 = vmatpush.bf16.msra.mxu0 %v389
  %509 = vmatpush.bf16.msra.mxu0 %v388
  %510 = vmatpush.bf16.msra.mxu0 %v387
  %511 = vmatpush.bf16.msra.mxu0 %v386
  %512 = vmatpush.bf16.msra.mxu0 %v385
  %513 = vmatpush.bf16.msra.mxu0 %v384
  %514 = vmatpush.bf16.msra.mxu0 %v383
  %515 = vmatpush.bf16.msra.mxu0 %v382
  %516 = vmatmul.bf16.gmra.mxu0 %v143
  %v517 = vpop.f32.mrf.mxu0
  %v518 = vadd.f32 %v504, %v517
  %v519 = vpop.f32.mrf.mxu0
  %v520 = vadd.f32 %v506, %v519
  %521 = vdwg.mxu0
  %v522 = vxor.u32 %v518, 2147483648
  %v523 = vxor.u32 %v520, 2147483648
  %v524 = vmul.f32 %v522, 1.442695
  %v525 = vpow.pop %v524
  %v526 = vmul.f32 %v523, 1.442695
  %v527 = vpow.pop %v526
  %v528 = vadd.f32 %v525, 1.0
  %v529 = vadd.f32 %v527, 1.0
  %v530 = vrcp.pop %v528
  %v531 = vmul.f32 %v528, %v530
  %v532 = vsub.f32 1.0, %v531
  %v533 = vmul.f32 %v530, %v532
  %v534 = vadd.f32 %v530, %v533
  %vm535 = vweird.f32 %v528
  %vm536 = vweird.f32 %v530
  %vm537 = vmor %vm535, %vm536
  %v538 = vsel %vm537, %v530, %v534
  %v539 = vand.u32 2147483647, %v528
  %vm540 = vcmp.eq.f32.partialorder %v539, 8.507059e+37
  %v541 = vand.u32 %v528, 2147483648
  %v542 = vor.u32 1.1754944e-38, %v541
  %v543 = vsel %vm540, %v542, %v538
  %v544 = vmul.f32 1.0, %v543
  %v545 = vrcp.pop %v529
  %v546 = vmul.f32 %v529, %v545
  %v547 = vsub.f32 1.0, %v546
  %v548 = vmul.f32 %v545, %v547
  %v549 = vadd.f32 %v545, %v548
  %vm550 = vweird.f32 %v529
  %vm551 = vweird.f32 %v545
  %vm552 = vmor %vm550, %vm551
  %v553 = vsel %vm552, %v545, %v549
  %v554 = vand.u32 2147483647, %v529
  %vm555 = vcmp.eq.f32.partialorder %v554, 8.507059e+37
  %v556 = vand.u32 %v529, 2147483648
  %v557 = vor.u32 1.1754944e-38, %v556
  %v558 = vsel %vm555, %v557, %v553
  %v559 = vmul.f32 1.0, %v558
  %vm560 = vcmask 15360
  %561 = vst.msk [vmem:[%s3] sm:$0xff] %vm560, %v544
  %562 = vst.msk [vmem:[%s3 + $0x8] sm:$0xff] %vm560, %v559
  // Predicated region
  $region14: #{uie_forward.1} parent=0 // pred_check
    _
  $region15: #{uie_forward.1} parent=0 // pred_check_branch
    %564 = sbr.rel (0) target = $region17
  $region16: #{uie_forward.1} parent=0 // pred_region
    _
  $region17: #{uie_forward.1} parent=0 // pred_fallthru
    _
  // Predicated region
  $region18: #{uie_forward.1} parent=0 // pred_check
    _
  $region19: #{uie_forward.1} parent=0 // pred_check_branch
    %566 = sbr.rel (0) target = $region21
  $region20: #{uie_forward.1} parent=0 // pred_region
    _
  $region21: #{uie_forward.1} parent=0 // pred_fallthru
    _

</llo_original>
